<compile_context>
chip_gen: v7x
topology: tpu7x:2x2x1
jax: 0.10.0
libtpu: 0.0.40
codegen_flags: <defaults>
</compile_context>

<pallas_src>
import jax
import jax.numpy as jnp
from jax.experimental import pallas as pl
from jax.experimental.pallas import tpu as pltpu

NEG_SLOPE = 0.01   # F.leaky_relu default
EPS = 1e-12        # F.normalize default eps

# Encoder row-tile cap (x tile = 1024 x 768 bf16 = 1.5 MiB per buffer).
MAX_TM_ENC = 1024


def _leaky_relu(x):
    return jnp.where(x >= 0, x, NEG_SLOPE * x)


def _ceil_to(x, m):
    return ((x + m - 1) // m) * m


def _layer_caps():
    """Per-generation (row tile cap, K tile cap, VMEM budget) for the layer kernel.

    Conservative default (TM=1024, TK=4096, 48 MiB) fits v7x's 64 MiB/TC VMEM with
    headroom; on 128 MiB parts (v5e/v6e) TK is pushed to 8192 / 64 MiB budget.
    """
    tm, tk, vmem = 1024, 4096, 48 * 1024 * 1024
    try:
        info = pltpu.get_tpu_info()
        if getattr(info, "vmem_capacity_bytes", 0) >= 96 * 1024 * 1024:
            tk, vmem = 8192, 64 * 1024 * 1024
    except Exception:
        pass
    return tm, tk, vmem


def _layer_tiling(n, max_tm, max_tk):
    """Pick (padded N, row tile, K tile) for the propagation-layer kernel."""
    n_pad = _ceil_to(max(n, 1), 128)
    k_steps = -(-n_pad // max_tk)
    tk = _ceil_to(-(-n_pad // k_steps), 128)
    n_pad = tk * k_steps
    tm = min(max_tm, n_pad)
    while n_pad % tm:          # always terminates (n_pad is a multiple of 128)
        tm -= 8
    return n_pad, tm, tk


def _row_tiling(n, max_tm):
    """Pick (padded rows, row tile) for the encoder kernel."""
    n_pad = _ceil_to(max(n, 1), 8)
    tm = min(max_tm, n_pad)
    n_pad = _ceil_to(n_pad, tm)
    return n_pad, tm


# ---------------------------------------------------------------------------
# Kernel 1: name/sentence embedding encoder MLP (row-tiled, resident weights)
# ---------------------------------------------------------------------------
def encoder_kernel(x_ref, w1_ref, w2_ref, o_ref):
    # Linear(768->32, no bias) -> ReLU -> Dropout(identity, eval) -> Linear(32->16)
    # TODO(synk): Dropout(p=0.5) between the two Linears is identity (eval-mode).
    h = jnp.dot(x_ref[...], w1_ref[...], preferred_element_type=jnp.float32)
    h = jnp.maximum(h, 0.0)
    o_ref[...] = jnp.dot(h.astype(jnp.bfloat16), w2_ref[...],
                         preferred_element_type=jnp.float32)


def run_encoder(x, w1_t, w2_t, *, max_tm=MAX_TM_ENC):
    n, d_in = x.shape
    d_hid = w1_t.shape[1]
    d_out = w2_t.shape[1]
    n_pad, tm = _row_tiling(n, max_tm)
    if n_pad != n:
        x = jnp.pad(x, ((0, n_pad - n), (0, 0)))
    x_bf16 = x.astype(jnp.bfloat16)           # halve HBM traffic, bf16 MXU path
    w1_bf16 = w1_t.astype(jnp.bfloat16)
    w2_bf16 = w2_t.astype(jnp.bfloat16)

    out = pl.pallas_call(
        encoder_kernel,
        out_shape=jax.ShapeDtypeStruct((n_pad, d_out), jnp.float32),
        grid=(n_pad // tm,),
        in_specs=[
            pl.BlockSpec((tm, d_in), lambda i: (i, 0)),      # streamed rows
            pl.BlockSpec((d_in, d_hid), lambda i: (0, 0)),   # resident weights
            pl.BlockSpec((d_hid, d_out), lambda i: (0, 0)),
        ],
        out_specs=pl.BlockSpec((tm, d_out), lambda i: (i, 0)),
        compiler_params=pltpu.CompilerParams(
            dimension_semantics=("parallel",),
            vmem_limit_bytes=32 * 1024 * 1024),
    )(x_bf16, w1_bf16, w2_bf16)
    return out[:n]


# ---------------------------------------------------------------------------
# Kernel 2: one NGCF propagation layer, tiled over (row tiles, K tiles)
#   acc  = sum_k  adj[i, k] @ ego[k]           (bf16 x bf16, f32 VMEM accumulator)
#   epilogue (last K step):
#     side = row_scale * acc                   (row_scale == 1 if adj pre-normalized)
#     sum  = lrelu(side @ Wgc + bgc)
#     bi   = lrelu((ego_rows * side) @ Wbi + bbi)
#     ego' = sum + bi ; norm = L2-normalize rows
#
# Invariant (documented per review): padded adj rows/cols are zero, so padded
# rows produce only lrelu(bias) junk which never feeds a real row (padded adj
# COLUMNS are zero) and is sliced off by the wrapper.
# ---------------------------------------------------------------------------
def ngcf_layer_kernel(adj_ref, ego_k_ref, ego_i_ref, scale_ref, wgc_ref, bgc_ref,
                      wbi_ref, bbi_ref, ego_out_ref, norm_out_ref, acc_ref):
    k = pl.program_id(1)

    @pl.when(k == 0)
    def _():
        acc_ref[...] = jnp.zeros_like(acc_ref)

    # bf16 x bf16 on the MXU, f32 accumulation (both operands pre-cast outside).
    acc_ref[...] += jnp.dot(adj_ref[...], ego_k_ref[...],
                            preferred_element_type=jnp.float32)

    @pl.when(k == pl.num_programs(1) - 1)
    def _():
        side = acc_ref[...] * scale_ref[...]      # fold degree normalization here
        ego_i = ego_i_ref[...]
        sum_emb = _leaky_relu(
            jnp.dot(side, wgc_ref[...], preferred_element_type=jnp.float32)
            + bgc_ref[...])
        bi_emb = _leaky_relu(
            jnp.dot(ego_i * side, wbi_ref[...], preferred_element_type=jnp.float32)
            + bbi_ref[...])
        new_ego = sum_emb + bi_emb
        # TODO(synk): per-layer Dropout treated as identity (eval-mode semantics).
        # F.normalize(p=2, dim=1): x / max(||x||, eps) == x * rsqrt(max(sumsq, eps^2))
        sumsq = jnp.sum(new_ego * new_ego, axis=1, keepdims=True)
        inv_norm = jax.lax.rsqrt(jnp.maximum(sumsq, EPS * EPS))
        ego_out_ref[...] = new_ego
        norm_out_ref[...] = new_ego * inv_norm


def run_ngcf_layer(adj_bf16, ego_bf16, ego_f32, row_scale, wgc_t, bgc, wbi_t, bbi,
                   *, tm, tk, vmem_limit_bytes):
    n_pad, d_in = ego_f32.shape
    d_out = wgc_t.shape[1]
    grid = (n_pad // tm, n_pad // tk)   # rows parallel, K (reduction) last

    return pl.pallas_call(
        ngcf_layer_kernel,
        out_shape=(jax.ShapeDtypeStruct((n_pad, d_out), jnp.float32),
                   jax.ShapeDtypeStruct((n_pad, d_out), jnp.float32)),
        grid=grid,
        in_specs=[
            pl.BlockSpec((tm, tk), lambda i, k: (i, k)),        # adj tile (bf16)
            pl.BlockSpec((tk, d_in), lambda i, k: (k, 0)),      # ego bf16: K operand
            pl.BlockSpec((tm, d_in), lambda i, k: (i, 0)),      # ego f32: row block (bi)
            pl.BlockSpec((tm, 1), lambda i, k: (i, 0)),         # per-row scale
            pl.BlockSpec((d_in, d_out), lambda i, k: (0, 0)),   # Wgc (resident)
            pl.BlockSpec((1, d_out), lambda i, k: (0, 0)),      # bgc (resident)
            pl.BlockSpec((d_in, d_out), lambda i, k: (0, 0)),   # Wbi (resident)
            pl.BlockSpec((1, d_out), lambda i, k: (0, 0)),      # bbi (resident)
        ],
        out_specs=(pl.BlockSpec((tm, d_out), lambda i, k: (i, 0)),
                   pl.BlockSpec((tm, d_out), lambda i, k: (i, 0))),
        scratch_shapes=[pltpu.VMEM((tm, d_in), jnp.float32)],
        compiler_params=pltpu.CompilerParams(
            dimension_semantics=("parallel", "arbitrary"),
            vmem_limit_bytes=vmem_limit_bytes),
    )(adj_bf16, ego_bf16, ego_f32, row_scale, wgc_t, bgc, wbi_t, bbi)


# ---------------------------------------------------------------------------
# Full NGCFDL forward (glue in plain JAX, hot paths in Pallas kernels above)
#
# If `row_scale` is given, `adj` is treated as the UN-normalized (e.g. binary)
# matrix and the kernel computes diag(row_scale) @ adj @ ego, which is exactly
# torch.sparse.mm(adj_normalized, ego) for adj_normalized = diag(row_scale)@adj
# — and makes the bf16 adj operand exact.  With row_scale=None, adj is used
# as-is (original module semantics).
# ---------------------------------------------------------------------------
def ngcfdl_forward(params, adj, user_name_embs, sent_embs, n_users, n_items,
                   *, row_scale=None, max_tm=None, max_tk=None,
                   vmem_limit_bytes=None, enc_tm=MAX_TM_ENC):
    cap_tm, cap_tk, cap_vmem = _layer_caps()
    max_tm = cap_tm if max_tm is None else max_tm
    max_tk = cap_tk if max_tk is None else max_tk
    vmem_limit_bytes = cap_vmem if vmem_limit_bytes is None else vmem_limit_bytes

    # Encoders: (n, 768) -> (n, 16)
    user_created = run_encoder(user_name_embs, params["u_enc_w1_t"],
                               params["u_enc_w2_t"], max_tm=enc_tm)
    item_created = run_encoder(sent_embs, params["i_enc_w1_t"],
                               params["i_enc_w2_t"], max_tm=enc_tm)

    # Concatenate learned embedding tables with encoder outputs -> (n, 32) each
    agg_user = jnp.concatenate([params["user_embedding"], user_created], axis=1)
    agg_item = jnp.concatenate([params["item_embedding"], item_created], axis=1)
    ego0 = jnp.concatenate([agg_user, agg_item], axis=0)          # (N, 32)

    N = n_users + n_items
    n_pad, tm, tk = _layer_tiling(N, max_tm=max_tm, max_tk=max_tk)

    # Keep a SINGLE dense adj copy live: cast to bf16 first, then pad in bf16
    # (padded rows/cols are zero; see kernel invariant comment).
    adj_bf16 = adj if adj.dtype == jnp.bfloat16 else adj.astype(jnp.bfloat16)
    if n_pad != N:
        adj_bf16 = jnp.pad(adj_bf16, ((0, n_pad - N), (0, n_pad - N)))

    if row_scale is None:
        scale = jnp.ones((n_pad, 1), jnp.float32)
    else:
        scale = jnp.reshape(row_scale.astype(jnp.float32), (N, 1))
        if n_pad != N:
            scale = jnp.pad(scale, ((0, n_pad - N), (0, 0)))

    ego = jnp.pad(ego0, ((0, n_pad - N), (0, 0))) if n_pad != N else ego0

    all_embeddings = [ego0]
    for layer in params["layers"]:
        # Pre-cast the K-operand once per layer: halves the dominant repeated
        # ego stream and removes the per-step VPU cast inside the kernel.
        ego_bf16 = ego.astype(jnp.bfloat16)
        ego, norm = run_ngcf_layer(adj_bf16, ego_bf16, ego, scale,
                                   layer["wgc_t"], layer["bgc"],
                                   layer["wbi_t"], layer["bbi"],
                                   tm=tm, tk=tk,
                                   vmem_limit_bytes=vmem_limit_bytes)
        all_embeddings.append(norm[:N])

    all_embeddings = jnp.concatenate(all_embeddings, axis=1)
    return all_embeddings[:n_users], all_embeddings[n_users:]


# ---------------------------------------------------------------------------
# Pure-JAX f32 reference (for validation of the tiled/bf16 kernels)
# ---------------------------------------------------------------------------
def ngcfdl_reference(params, adj, user_name_embs, sent_embs, n_users, n_items):
    def enc(x, w1, w2):
        return jnp.maximum(x @ w1, 0.0) @ w2

    u_created = enc(user_name_embs, params["u_enc_w1_t"], params["u_enc_w2_t"])
    i_created = enc(sent_embs, params["i_enc_w1_t"], params["i_enc_w2_t"])
    ego = jnp.concatenate(
        [jnp.concatenate([params["user_embedding"], u_created], axis=1),
         jnp.concatenate([params["item_embedding"], i_created], axis=1)], axis=0)
    outs = [ego]
    for layer in params["layers"]:
        side = adj @ ego
        sum_emb = _leaky_relu(side @ layer["wgc_t"] + layer["bgc"])
        bi_emb = _leaky_relu((ego * side) @ layer["wbi_t"] + layer["bbi"])
        ego = sum_emb + bi_emb
        norm = ego / jnp.maximum(
            jnp.sqrt(jnp.sum(ego * ego, axis=1, keepdims=True)), EPS)
        outs.append(norm)
    all_emb = jnp.concatenate(outs, axis=1)
    return all_emb[:n_users], all_emb[n_users:]


def xavier_uniform(key, shape):
    fan_in, fan_out = shape[0], shape[1]
    bound = jnp.sqrt(6.0 / (fan_in + fan_out))
    return jax.random.uniform(key, shape, jnp.float32, -bound, bound)


if __name__ == "__main__":
    # Small but forward-consistent shapes; tile caps lowered so the demo
    # exercises a real (rows x K) grid with accumulation across K tiles.
    n_users, n_items = 96, 160
    N = n_users + n_items
    embedding_dim = 32      # forced to 32 in __init__
    grec_dim = 16
    text_dim = 768
    weight_size = [32, 32]  # 2 propagation layers
    layer_dims = [embedding_dim] + weight_size

    key = jax.random.PRNGKey(0)
    keys = jax.random.split(key, 16)

    # Parameters (deterministic, in-script). torch Linear weights (out, in)
    # are pre-transposed to (in, out) so kernels compute x @ W.
    params = {
        "user_embedding": xavier_uniform(keys[0], (n_users, grec_dim)),
        "item_embedding": xavier_uniform(keys[1], (n_items, grec_dim)),
        "u_enc_w1_t": 0.05 * jax.random.normal(keys[2], (text_dim, 32), jnp.float32),
        "u_enc_w2_t": 0.05 * jax.random.normal(keys[3], (32, grec_dim), jnp.float32),
        "i_enc_w1_t": 0.05 * jax.random.normal(keys[4], (text_dim, 32), jnp.float32),
        "i_enc_w2_t": 0.05 * jax.random.normal(keys[5], (32, grec_dim), jnp.float32),
        "layers": [],
    }
    for i in range(len(weight_size)):
        d_in, d_out = layer_dims[i], layer_dims[i + 1]
        kk = jax.random.split(keys[6 + i], 4)
        params["layers"].append({
            "wgc_t": 0.1 * jax.random.normal(kk[0], (d_in, d_out), jnp.float32),
            "bgc": 0.01 * jax.random.normal(kk[1], (1, d_out), jnp.float32),
            "wbi_t": 0.1 * jax.random.normal(kk[2], (d_in, d_out), jnp.float32),
            "bbi": 0.01 * jax.random.normal(kk[3], (1, d_out), jnp.float32),
        })

    # Inputs: binary interaction matrix + per-row 1/deg scale (factored
    # normalization -> bf16 adj operand is exact). Stands in for torch.sparse.
    adj_bin = (jax.random.uniform(keys[10], (N, N)) > 0.7).astype(jnp.float32)
    deg = jnp.maximum(adj_bin.sum(axis=1), 1.0)
    row_scale = 1.0 / deg                                   # (N,)
    adj_bf16 = adj_bin.astype(jnp.bfloat16)                 # exact: entries in {0,1}
    user_name_embs = jax.random.normal(keys[11], (n_users, text_dim), jnp.float32)
    sent_embs = jax.random.normal(keys[12], (n_items, text_dim), jnp.float32)

    u_g, i_g = ngcfdl_forward(params, adj_bf16, user_name_embs, sent_embs,
                              n_users, n_items, row_scale=row_scale,
                              max_tm=128, max_tk=128, enc_tm=64)
    jax.block_until_ready((u_g, i_g))

    expected_cols = sum(layer_dims)
    assert u_g.shape == (n_users, expected_cols), u_g.shape
    assert i_g.shape == (n_items, expected_cols), i_g.shape

    # Validate against the f32 pure-JAX reference using the fully normalized adj.
    adj_norm = adj_bin * row_scale[:, None]
    u_ref, i_ref = ngcfdl_reference(params, adj_norm, user_name_embs, sent_embs,
                                    n_users, n_items)
    err = max(float(jnp.max(jnp.abs(u_g - u_ref))),
              float(jnp.max(jnp.abs(i_g - i_ref))))
    assert err < 1e-1, f"max abs error vs f32 reference: {err}"

    print("KERNEL_OK")
</pallas_src>

<mosaic_0001>
module attributes {stable_mosaic.version = 11 : i64} {
  func.func @encoder_kernel(%arg0: i32, %arg1: memref<64x768xbf16, #tpu.memory_space<vmem>>, %arg2: memref<768x32xbf16, #tpu.memory_space<vmem>>, %arg3: memref<32x16xbf16, #tpu.memory_space<vmem>>, %arg4: memref<64x16xf32, #tpu.memory_space<vmem>>) attributes {dimension_semantics = [#tpu.dimension_semantics<parallel>], iteration_bounds = array<i64: 2>, scalar_prefetch = 0 : i64, scratch_operands = 0 : i64, tpu.core_type = #tpu.core_type<tc>, window_params = [{transform_indices = @transform_0, window_bounds = array<i64: 64, 768>}, {pipeline_mode = #tpu.pipeline_mode<synchronous>, transform_indices = @transform_1, window_bounds = array<i64: 768, 32>}, {pipeline_mode = #tpu.pipeline_mode<synchronous>, transform_indices = @transform_2, window_bounds = array<i64: 32, 16>}, {transform_indices = @transform_3, window_bounds = array<i64: 64, 16>}]} {
    %c0 = arith.constant 0 : index
    %c0_0 = arith.constant 0 : index
    %0 = vector.load %arg1[%c0, %c0_0] : memref<64x768xbf16, #tpu.memory_space<vmem>>, vector<64x768xbf16>
    %c0_1 = arith.constant 0 : index
    %c0_2 = arith.constant 0 : index
    %1 = vector.load %arg2[%c0_1, %c0_2] : memref<768x32xbf16, #tpu.memory_space<vmem>>, vector<768x32xbf16>
    %cst = arith.constant dense<0.000000e+00> : vector<64x32xf32>
    %2 = tpu.matmul %0, %1, %cst {dimension_numbers = #tpu.dot_dimension_numbers<[1], [0], [0], [1], [0, 0, 1, 1], [], []>} : vector<64x768xbf16>, vector<768x32xbf16>, vector<64x32xf32> -> vector<64x32xf32>
    %cst_3 = arith.constant 0.000000e+00 : f32
    %3 = vector.broadcast %cst_3 : f32 to vector<64x32xf32>
    %4 = arith.maximumf %2, %3 : vector<64x32xf32>
    %5 = arith.truncf %4 : vector<64x32xf32> to vector<64x32xbf16>
    %c0_4 = arith.constant 0 : index
    %c0_5 = arith.constant 0 : index
    %6 = vector.load %arg3[%c0_4, %c0_5] : memref<32x16xbf16, #tpu.memory_space<vmem>>, vector<32x16xbf16>
    %cst_6 = arith.constant dense<0.000000e+00> : vector<64x16xf32>
    %7 = tpu.matmul %5, %6, %cst_6 {dimension_numbers = #tpu.dot_dimension_numbers<[1], [0], [0], [1], [0, 0, 1, 1], [], []>} : vector<64x32xbf16>, vector<32x16xbf16>, vector<64x16xf32> -> vector<64x16xf32>
    %c0_7 = arith.constant 0 : index
    %c0_8 = arith.constant 0 : index
    %8 = vector.load %arg4[%c0_7, %c0_8] : memref<64x16xf32, #tpu.memory_space<vmem>>, vector<64x16xf32>
    tpu.vector_store %arg4[%c0_7, %c0_8], %7 {strides = array<i32>} : memref<64x16xf32, #tpu.memory_space<vmem>>, vector<64x16xf32>,
    return
  }
  func.func @transform_0(%arg0: i32) -> (i32, i32) {
    %c0_i32 = arith.constant 0 : i32
    %c0_i32_0 = arith.constant 0 : i32
    return %arg0, %c0_i32 : i32, i32
  }
  func.func @transform_1(%arg0: i32) -> (i32, i32) {
    %c0_i32 = arith.constant 0 : i32
    %c0_i32_0 = arith.constant 0 : i32
    %c0_i32_1 = arith.constant 0 : i32
    return %c0_i32, %c0_i32_0 : i32, i32
  }
  func.func @transform_2(%arg0: i32) -> (i32, i32) {
    %c0_i32 = arith.constant 0 : i32
    %c0_i32_0 = arith.constant 0 : i32
    %c0_i32_1 = arith.constant 0 : i32
    return %c0_i32, %c0_i32_0 : i32, i32
  }
  func.func @transform_3(%arg0: i32) -> (i32, i32) {
    %c0_i32 = arith.constant 0 : i32
    %c0_i32_0 = arith.constant 0 : i32
    return %arg0, %c0_i32 : i32, i32
  }
}

</mosaic_0001>

<llo_original>
// kernel: tpu_custom_call.1
$region0: #{tpu_custom_call.1}
  #allocation0 [shape = 'u32[]', space=smem, size = 0x4, offset = 0x4, fixed_abs, tag = 'smem constant byte address 0x4 - core index']
  #allocation1 [shape = 'u32[144,128]{1,0:T(1,128)}', space=vmem, size = 0x12000, scoped, tag = 'internal scratch']
  %s0 = inlined_call_operand.vmem [shape: bf16[128,768], index: 0, kind: input, shape index: {}]
  %s1 = inlined_call_operand.vmem [shape: bf16[768,32], index: 1, kind: input, shape index: {}]
  %s2 = inlined_call_operand.vmem [shape: bf16[32,16], index: 2, kind: input, shape index: {}]
  %s3 = inlined_call_operand.vmem [shape: f32[128,16], index: 3, kind: output, shape index: {}]
  %s4 = sld [smem:[#allocation0]]
  $region45: #{tpu_custom_call.1} parent=0
    _
  %s6 = ssub.s32 1, %s4
  %s7 = scalar_select 0, %s6, %s4
  loop: start=0, step=1, limit=4
  $region2: #{tpu_custom_call.1} parent=0 // loop_pre_header
    _
  $region3: #{tpu_custom_call.1} parent=0 // loop_header
    %s9 = sphi 0, %s13
    %p10 = scmp.ge.s32.totalorder %s9, 4
    %s19 = sphi 0, %s21
    %s22 = sphi 0, %s19
    %s23 = sphi 0, %s22
    %s39 = sphi 0, %s23
    %s43 = sphi 0, %s43
    %s45 = sphi 0, %s43
    %s46 = sphi 0, %s45
    %s60 = sphi 0, %s46
    %s64 = sphi 0, %s64
    %s66 = sphi 0, %s64
    %s67 = sphi 0, %s66
    %s81 = sphi 0, %s67
    %s87 = sphi 0, %s89
    %s90 = sphi 0, %s87
    %s91 = sphi 0, %s90
    %s107 = sphi 0, %s91
  $region4: #{tpu_custom_call.1} parent=0 // loop_header_branch
    %12 = sbr.rel (%p10) target = $region8
  $region5: #{tpu_custom_call.1} parent=0 // loop_body
    %s14 = ssub.s32 %s9, 1
    %s15 = ssub.s32 %s9, 2
    %s16 = sadd.s32 %s9, 1
    %s17 = ssub.s32 %s9, %s16
    %p18 = scmp.eq.s32.totalorder %s17, 0
    %s20 = sadd.s32 %s19, 1
    %s21 = scalar_select %p18, %s19, %s20
    %p24 = pneg %p18
    %p25 = scmp.eq.s32.totalorder %s9, 1
    %p26 = por %p24, %p25
    %p27 = scmp.ne.s32.totalorder %s19, %s22
    %p28 = scmp.eq.s32.totalorder %s9, 0
    %p29 = por %p27, %p28
    %p30 = scmp.ne.s32.totalorder %s19, %s22
    %p31 = scmp.eq.s32.totalorder %s14, 1
    %p32 = por %p30, %p31
    %p33 = scmp.ne.s32.totalorder %s22, %s23
    %p34 = scmp.eq.s32.totalorder %s14, 0
    %p35 = por %p33, %p34
    %p36 = scmp.ne.s32.totalorder %s22, %s23
    %p37 = scmp.eq.s32.totalorder %s15, 1
    %p38 = por %p36, %p37
    %p40 = scmp.ne.s32.totalorder %s23, %s39
    %p41 = scmp.eq.s32.totalorder %s15, 0
    %p42 = por %p40, %p41
    %s44 = sadd.s32 %s43, 1
    %p47 = scmp.eq.s32.totalorder %s9, 1
    %p48 = scmp.ne.s32.totalorder %s43, %s45
    %p49 = scmp.eq.s32.totalorder %s9, 0
    %p50 = por %p48, %p49
    %p51 = scmp.ne.s32.totalorder %s43, %s45
    %p52 = scmp.eq.s32.totalorder %s14, 1
    %p53 = por %p51, %p52
    %p54 = scmp.ne.s32.totalorder %s45, %s46
    %p55 = scmp.eq.s32.totalorder %s14, 0
    %p56 = por %p54, %p55
    %p57 = scmp.ne.s32.totalorder %s45, %s46
    %p58 = scmp.eq.s32.totalorder %s15, 1
    %p59 = por %p57, %p58
    %p61 = scmp.ne.s32.totalorder %s46, %s60
    %p62 = scmp.eq.s32.totalorder %s15, 0
    %p63 = por %p61, %p62
    %s65 = sadd.s32 %s64, 1
    %p68 = scmp.eq.s32.totalorder %s9, 1
    %p69 = scmp.ne.s32.totalorder %s64, %s66
    %p70 = scmp.eq.s32.totalorder %s9, 0
    %p71 = por %p69, %p70
    %p72 = scmp.ne.s32.totalorder %s64, %s66
    %p73 = scmp.eq.s32.totalorder %s14, 1
    %p74 = por %p72, %p73
    %p75 = scmp.ne.s32.totalorder %s66, %s67
    %p76 = scmp.eq.s32.totalorder %s14, 0
    %p77 = por %p75, %p76
    %p78 = scmp.ne.s32.totalorder %s66, %s67
    %p79 = scmp.eq.s32.totalorder %s15, 1
    %p80 = por %p78, %p79
    %p82 = scmp.ne.s32.totalorder %s67, %s81
    %p83 = scmp.eq.s32.totalorder %s15, 0
    %p84 = por %p82, %p83
    %s85 = ssub.s32 %s9, %s16
    %p86 = scmp.eq.s32.totalorder %s85, 0
    %s88 = sadd.s32 %s87, 1
    %s89 = scalar_select %p86, %s87, %s88
    %p92 = pneg %p86
    %p93 = scmp.eq.s32.totalorder %s9, 1
    %p94 = por %p92, %p93
    %p95 = scmp.ne.s32.totalorder %s87, %s90
    %p96 = scmp.eq.s32.totalorder %s9, 0
    %p97 = por %p95, %p96
    %p98 = scmp.ne.s32.totalorder %s87, %s90
    %p99 = scmp.eq.s32.totalorder %s14, 1
    %p100 = por %p98, %p99
    %p101 = scmp.ne.s32.totalorder %s90, %s91
    %p102 = scmp.eq.s32.totalorder %s14, 0
    %p103 = por %p101, %p102
    %p104 = scmp.ne.s32.totalorder %s90, %s91
    %p105 = scmp.eq.s32.totalorder %s15, 1
    %p106 = por %p104, %p105
    %p108 = scmp.ne.s32.totalorder %s91, %s107
    %p109 = scmp.eq.s32.totalorder %s15, 0
    %p110 = por %p108, %p109
    %p111 = scmp.le.s32.totalorder 1, %s9
    %p112 = scmp.lt.s32.totalorder %s9, 3
    %p113 = pnand %p111, %p112
    %p114 = pneg %p113
    // Predicated region
    $region9: #{tpu_custom_call.1} parent=5 // pred_check
      _
    $region10: #{tpu_custom_call.1} parent=5 // pred_check_branch
      %116 = sbr.rel (%p113) target = $region12
    $region11: #{tpu_custom_call.1} parent=5 // pred_region
      %s117 = ssub.s32 %s9, 1
      // Predicated region
      $region13: #{tpu_custom_call.1} parent=11 // pred_check
        %p118 = pneg %p56
      $region14: #{tpu_custom_call.1} parent=11 // pred_check_branch
        %120 = sbr.rel (%p118) target = $region16
      $region15: #{tpu_custom_call.1} parent=11 // pred_region
        _
      $region16: #{tpu_custom_call.1} parent=11 // pred_fallthru
        _
      // Predicated region
      $region17: #{tpu_custom_call.1} parent=11 // pred_check
        %p121 = pneg %p77
      $region18: #{tpu_custom_call.1} parent=11 // pred_check_branch
        %123 = sbr.rel (%p121) target = $region20
      $region19: #{tpu_custom_call.1} parent=11 // pred_region
        _
      $region20: #{tpu_custom_call.1} parent=11 // pred_fallthru
        _
    $region12: #{tpu_custom_call.1} parent=5 // pred_fallthru
      _
    %p124 = scmp.lt.s32.totalorder %s9, 2
    // Predicated region
    $region21: #{tpu_custom_call.1} parent=5 // pred_check
      %p125 = pneg %p124
    $region22: #{tpu_custom_call.1} parent=5 // pred_check_branch
      %127 = sbr.rel (%p125) target = $region24
    $region23: #{tpu_custom_call.1} parent=5 // pred_region
      // Predicated region
      $region25: #{tpu_custom_call.1} parent=23 // pred_check
        %p128 = pneg %p29
      $region26: #{tpu_custom_call.1} parent=23 // pred_check_branch
        %130 = sbr.rel (%p128) target = $region28
      $region27: #{tpu_custom_call.1} parent=23 // pred_region
        %s131 = smul.u32 8, %s9
        %p132 = scmp.lt.s32.totalorder %s131, 15
        %s133 = scalar_select %p132, %s131, 15
        %s134 = smul.addr %s133, 6
        %s135 = smul.addr %s134, 4
        %s136 = scalar_lea.vmem %s0, %s135
        %s137 = smul.u32 8, %s9
      $region28: #{tpu_custom_call.1} parent=23 // pred_fallthru
        _
    $region24: #{tpu_custom_call.1} parent=5 // pred_fallthru
      _
    %p138 = scmp.le.s32.totalorder 1, %s9
    %p139 = scmp.lt.s32.totalorder %s9, 3
    %p140 = pnand %p138, %p139
    %p141 = pneg %p140
    // Predicated region
    $region29: #{tpu_custom_call.1} parent=5 // pred_check
      _
    $region30: #{tpu_custom_call.1} parent=5 // pred_check_branch
      %143 = sbr.rel (%p140) target = $region32
    $region31: #{tpu_custom_call.1} parent=5 // pred_region
      %s144 = ssub.s32 %s9, 1
      %s145 = smul.u32 8, %s14
      %p146 = scmp.lt.s32.totalorder %s145, 15
      %s147 = scalar_select %p146, %s145, 15
      %s148 = smul.addr %s147, 6
      %s149 = smul.addr %s148, 4
      %s150 = scalar_lea.vmem %s0, %s149
      %p151 = pneg %p35
      %p152 = pneg %p32
      %p153 = pneg %p56
      %p154 = pneg %p53
      %p155 = pneg %p77
      %p156 = pneg %p74
      %p157 = pneg %p103
      %p158 = pneg %p100
      %s159 = smul.u32 8, %s14
      %p160 = scmp.lt.s32.totalorder %s159, 15
      %s161 = scalar_select %p160, %s159, 15
      %s162 = smul.addr %s161, 8
      %s163 = scalar_lea.vmem %s3, %s162
      %s164 = smul.u32 8, %s14
      %p165 = scmp.lt.s32.totalorder %s164, 15
      %s166 = scalar_select %p165, %s164, 15
      %s167 = smul.addr %s166, 6
      %s168 = smul.addr %s167, 4
      %s169 = scalar_lea.vmem %s0, %s168
      %s170 = smul.u32 8, %s14
      %s171 = smul.u32 8, %s14
      %p172 = scmp.lt.s32.totalorder %s171, 15
      %s173 = scalar_select %p172, %s171, 15
      %s174 = smul.addr %s173, 8
      %s175 = scalar_lea.vmem %s3, %s174
      %s176 = smul.u32 8, %s14
      %v178 = vld [vmem:[%s169] sm:$0xff]
      %v179 = vld [vmem:[%s169 + $0x8] sm:$0xff]
      %v180 = vld [vmem:[%s169 + $0x10] sm:$0xff]
      %v181 = vld [vmem:[%s169 + $0x18] sm:$0xff]
      %v182 = vld [vmem:[%s169 + $0x20] sm:$0xff]
      %v183 = vld [vmem:[%s169 + $0x28] sm:$0xff]
      %v184 = vld [vmem:[%s169 + $0x30] sm:$0xff]
      %v185 = vld [vmem:[%s169 + $0x38] sm:$0xff]
      %v186 = vld [vmem:[%s169 + $0x40] sm:$0xff]
      %v187 = vld [vmem:[%s169 + $0x48] sm:$0xff]
      %v188 = vld [vmem:[%s169 + $0x50] sm:$0xff]
      %v189 = vld [vmem:[%s169 + $0x58] sm:$0xff]
      %v190 = vld [vmem:[%s169 + $0x60] sm:$0xff]
      %v191 = vld [vmem:[%s169 + $0x68] sm:$0xff]
      %v192 = vld [vmem:[%s169 + $0x70] sm:$0xff]
      %v193 = vld [vmem:[%s169 + $0x78] sm:$0xff]
      %v194 = vld [vmem:[%s169 + $0x80] sm:$0xff]
      %v195 = vld [vmem:[%s169 + $0x88] sm:$0xff]
      %v196 = vld [vmem:[%s169 + $0x90] sm:$0xff]
      %v197 = vld [vmem:[%s169 + $0x98] sm:$0xff]
      %v198 = vld [vmem:[%s169 + $0xa0] sm:$0xff]
      %v199 = vld [vmem:[%s169 + $0xa8] sm:$0xff]
      %v200 = vld [vmem:[%s169 + $0xb0] sm:$0xff]
      %v201 = vld [vmem:[%s169 + $0xb8] sm:$0xff]
      %v202 = vld [vmem:[%s1] sm:$0xf]
      %v203 = vld [vmem:[%s1 + $0x4] sm:$0xf]
      %v204 = vld [vmem:[%s1 + $0x8] sm:$0xf]
      %v205 = vld [vmem:[%s1 + $0xc] sm:$0xf]
      %v206 = vld [vmem:[%s1 + $0x10] sm:$0xf]
      %v207 = vld [vmem:[%s1 + $0x14] sm:$0xf]
      %v208 = vld [vmem:[%s1 + $0x18] sm:$0xf]
      %v209 = vld [vmem:[%s1 + $0x1c] sm:$0xf]
      %v210 = vld [vmem:[%s1 + $0x20] sm:$0xf]
      %v211 = vld [vmem:[%s1 + $0x24] sm:$0xf]
      %v212 = vld [vmem:[%s1 + $0x28] sm:$0xf]
      %v213 = vld [vmem:[%s1 + $0x2c] sm:$0xf]
      %v214 = vld [vmem:[%s1 + $0x30] sm:$0xf]
      %v215 = vld [vmem:[%s1 + $0x34] sm:$0xf]
      %v216 = vld [vmem:[%s1 + $0x38] sm:$0xf]
      %v217 = vld [vmem:[%s1 + $0x3c] sm:$0xf]
      %v218 = vld [vmem:[%s1 + $0x40] sm:$0xf]
      %v219 = vld [vmem:[%s1 + $0x44] sm:$0xf]
      %v220 = vld [vmem:[%s1 + $0x48] sm:$0xf]
      %v221 = vld [vmem:[%s1 + $0x4c] sm:$0xf]
      %v222 = vld [vmem:[%s1 + $0x50] sm:$0xf]
      %v223 = vld [vmem:[%s1 + $0x54] sm:$0xf]
      %v224 = vld [vmem:[%s1 + $0x58] sm:$0xf]
      %v225 = vld [vmem:[%s1 + $0x5c] sm:$0xf]
      %v226 = vld [vmem:[%s1 + $0x60] sm:$0xf]
      %v227 = vld [vmem:[%s1 + $0x64] sm:$0xf]
      %v228 = vld [vmem:[%s1 + $0x68] sm:$0xf]
      %v229 = vld [vmem:[%s1 + $0x6c] sm:$0xf]
      %v230 = vld [vmem:[%s1 + $0x70] sm:$0xf]
      %v231 = vld [vmem:[%s1 + $0x74] sm:$0xf]
      %v232 = vld [vmem:[%s1 + $0x78] sm:$0xf]
      %v233 = vld [vmem:[%s1 + $0x7c] sm:$0xf]
      %v234 = vld [vmem:[%s1 + $0x80] sm:$0xf]
      %v235 = vld [vmem:[%s1 + $0x84] sm:$0xf]
      %v236 = vld [vmem:[%s1 + $0x88] sm:$0xf]
      %v237 = vld [vmem:[%s1 + $0x8c] sm:$0xf]
      %v238 = vld [vmem:[%s1 + $0x90] sm:$0xf]
      %v239 = vld [vmem:[%s1 + $0x94] sm:$0xf]
      %v240 = vld [vmem:[%s1 + $0x98] sm:$0xf]
      %v241 = vld [vmem:[%s1 + $0x9c] sm:$0xf]
      %v242 = vld [vmem:[%s1 + $0xa0] sm:$0xf]
      %v243 = vld [vmem:[%s1 + $0xa4] sm:$0xf]
      %v244 = vld [vmem:[%s1 + $0xa8] sm:$0xf]
      %v245 = vld [vmem:[%s1 + $0xac] sm:$0xf]
      %v246 = vld [vmem:[%s1 + $0xb0] sm:$0xf]
      %v247 = vld [vmem:[%s1 + $0xb4] sm:$0xf]
      %v248 = vld [vmem:[%s1 + $0xb8] sm:$0xf]
      %v249 = vld [vmem:[%s1 + $0xbc] sm:$0xf]
      %v250 = vld [vmem:[%s1 + $0xc0] sm:$0xf]
      %v251 = vld [vmem:[%s1 + $0xc4] sm:$0xf]
      %v252 = vld [vmem:[%s1 + $0xc8] sm:$0xf]
      %v253 = vld [vmem:[%s1 + $0xcc] sm:$0xf]
      %v254 = vld [vmem:[%s1 + $0xd0] sm:$0xf]
      %v255 = vld [vmem:[%s1 + $0xd4] sm:$0xf]
      %v256 = vld [vmem:[%s1 + $0xd8] sm:$0xf]
      %v257 = vld [vmem:[%s1 + $0xdc] sm:$0xf]
      %v258 = vld [vmem:[%s1 + $0xe0] sm:$0xf]
      %v259 = vld [vmem:[%s1 + $0xe4] sm:$0xf]
      %v260 = vld [vmem:[%s1 + $0xe8] sm:$0xf]
      %v261 = vld [vmem:[%s1 + $0xec] sm:$0xf]
      %v262 = vld [vmem:[%s1 + $0xf0] sm:$0xf]
      %v263 = vld [vmem:[%s1 + $0xf4] sm:$0xf]
      %v264 = vld [vmem:[%s1 + $0xf8] sm:$0xf]
      %v265 = vld [vmem:[%s1 + $0xfc] sm:$0xf]
      %v266 = vld [vmem:[%s1 + $0x100] sm:$0xf]
      %v267 = vld [vmem:[%s1 + $0x104] sm:$0xf]
      %v268 = vld [vmem:[%s1 + $0x108] sm:$0xf]
      %v269 = vld [vmem:[%s1 + $0x10c] sm:$0xf]
      %v270 = vld [vmem:[%s1 + $0x110] sm:$0xf]
      %v271 = vld [vmem:[%s1 + $0x114] sm:$0xf]
      %v272 = vld [vmem:[%s1 + $0x118] sm:$0xf]
      %v273 = vld [vmem:[%s1 + $0x11c] sm:$0xf]
      %v274 = vld [vmem:[%s1 + $0x120] sm:$0xf]
      %v275 = vld [vmem:[%s1 + $0x124] sm:$0xf]
      %v276 = vld [vmem:[%s1 + $0x128] sm:$0xf]
      %v277 = vld [vmem:[%s1 + $0x12c] sm:$0xf]
      %v278 = vld [vmem:[%s1 + $0x130] sm:$0xf]
      %v279 = vld [vmem:[%s1 + $0x134] sm:$0xf]
      %v280 = vld [vmem:[%s1 + $0x138] sm:$0xf]
      %v281 = vld [vmem:[%s1 + $0x13c] sm:$0xf]
      %v282 = vld [vmem:[%s1 + $0x140] sm:$0xf]
      %v283 = vld [vmem:[%s1 + $0x144] sm:$0xf]
      %v284 = vld [vmem:[%s1 + $0x148] sm:$0xf]
      %v285 = vld [vmem:[%s1 + $0x14c] sm:$0xf]
      %v286 = vld [vmem:[%s1 + $0x150] sm:$0xf]
      %v287 = vld [vmem:[%s1 + $0x154] sm:$0xf]
      %v288 = vld [vmem:[%s1 + $0x158] sm:$0xf]
      %v289 = vld [vmem:[%s1 + $0x15c] sm:$0xf]
      %v290 = vld [vmem:[%s1 + $0x160] sm:$0xf]
      %v291 = vld [vmem:[%s1 + $0x164] sm:$0xf]
      %v292 = vld [vmem:[%s1 + $0x168] sm:$0xf]
      %v293 = vld [vmem:[%s1 + $0x16c] sm:$0xf]
      %v294 = vld [vmem:[%s1 + $0x170] sm:$0xf]
      %v295 = vld [vmem:[%s1 + $0x174] sm:$0xf]
      %v296 = vld [vmem:[%s1 + $0x178] sm:$0xf]
      %v297 = vld [vmem:[%s1 + $0x17c] sm:$0xf]
      %v322 = vunpack.c.l.b16 %v178
      %v323 = vunpack.c.h.b16 %v178
      %v324 = vunpack.c.l.b16 %v179
      %v325 = vunpack.c.h.b16 %v179
      %v326 = vunpack.c.l.b16 %v180
      %v327 = vunpack.c.h.b16 %v180
      %v328 = vunpack.c.l.b16 %v181
      %v329 = vunpack.c.h.b16 %v181
      %v330 = vunpack.c.l.b16 %v182
      %v331 = vunpack.c.h.b16 %v182
      %v332 = vunpack.c.l.b16 %v183
      %v333 = vunpack.c.h.b16 %v183
      %v334 = vunpack.c.l.b16 %v184
      %v335 = vunpack.c.h.b16 %v184
      %v336 = vunpack.c.l.b16 %v185
      %v337 = vunpack.c.h.b16 %v185
      %v338 = vunpack.c.l.b16 %v186
      %v339 = vunpack.c.h.b16 %v186
      %v340 = vunpack.c.l.b16 %v187
      %v341 = vunpack.c.h.b16 %v187
      %v342 = vunpack.c.l.b16 %v188
      %v343 = vunpack.c.h.b16 %v188
      %v344 = vunpack.c.l.b16 %v189
      %v345 = vunpack.c.h.b16 %v189
      %v346 = vunpack.c.l.b16 %v190
      %v347 = vunpack.c.h.b16 %v190
      %v348 = vunpack.c.l.b16 %v191
      %v349 = vunpack.c.h.b16 %v191
      %v350 = vunpack.c.l.b16 %v192
      %v351 = vunpack.c.h.b16 %v192
      %v352 = vunpack.c.l.b16 %v193
      %v353 = vunpack.c.h.b16 %v193
      %v354 = vunpack.c.l.b16 %v194
      %v355 = vunpack.c.h.b16 %v194
      %v356 = vunpack.c.l.b16 %v195
      %v357 = vunpack.c.h.b16 %v195
      %v358 = vunpack.c.l.b16 %v196
      %v359 = vunpack.c.h.b16 %v196
      %v360 = vunpack.c.l.b16 %v197
      %v361 = vunpack.c.h.b16 %v197
      %v362 = vunpack.c.l.b16 %v198
      %v363 = vunpack.c.h.b16 %v198
      %v364 = vunpack.c.l.b16 %v199
      %v365 = vunpack.c.h.b16 %v199
      %v366 = vunpack.c.l.b16 %v200
      %v367 = vunpack.c.h.b16 %v200
      %v368 = vunpack.c.l.b16 %v201
      %v369 = vunpack.c.h.b16 %v201
      %v370 = vpack.c.b16 %v328, %v322
      %v371 = vpack.c.b16 %v329, %v323
      %v372 = vpack.c.b16 %v330, %v324
      %v373 = vpack.c.b16 %v331, %v325
      %v374 = vpack.c.b16 %v332, %v326
      %v375 = vpack.c.b16 %v333, %v327
      %v376 = vpack.c.b16 %v340, %v334
      %v377 = vpack.c.b16 %v341, %v335
      %v378 = vpack.c.b16 %v342, %v336
      %v379 = vpack.c.b16 %v343, %v337
      %v380 = vpack.c.b16 %v344, %v338
      %v381 = vpack.c.b16 %v345, %v339
      %v382 = vpack.c.b16 %v352, %v346
      %v383 = vpack.c.b16 %v353, %v347
      %v384 = vpack.c.b16 %v354, %v348
      %v385 = vpack.c.b16 %v355, %v349
      %v386 = vpack.c.b16 %v356, %v350
      %v387 = vpack.c.b16 %v357, %v351
      %v388 = vpack.c.b16 %v364, %v358
      %v389 = vpack.c.b16 %v365, %v359
      %v390 = vpack.c.b16 %v366, %v360
      %v391 = vpack.c.b16 %v367, %v361
      %v392 = vpack.c.b16 %v368, %v362
      %v393 = vpack.c.b16 %v369, %v363
      %v514 = vunpack.c.l.b16 %v202
      %v515 = vunpack.c.l.b16 %v203
      %v516 = vunpack.c.l.b16 %v204
      %v517 = vunpack.c.l.b16 %v205
      %v518 = vunpack.c.l.b16 %v206
      %v519 = vunpack.c.l.b16 %v207
      %v520 = vunpack.c.l.b16 %v208
      %v521 = vunpack.c.l.b16 %v209
      %v522 = vunpack.c.l.b16 %v210
      %v523 = vunpack.c.l.b16 %v211
      %v524 = vunpack.c.l.b16 %v212
      %v525 = vunpack.c.l.b16 %v213
      %v526 = vunpack.c.l.b16 %v214
      %v527 = vunpack.c.l.b16 %v215
      %v528 = vunpack.c.l.b16 %v216
      %v529 = vunpack.c.l.b16 %v217
      %v530 = vunpack.c.l.b16 %v218
      %v531 = vunpack.c.l.b16 %v219
      %v532 = vunpack.c.l.b16 %v220
      %v533 = vunpack.c.l.b16 %v221
      %v534 = vunpack.c.l.b16 %v222
      %v535 = vunpack.c.l.b16 %v223
      %v536 = vunpack.c.l.b16 %v224
      %v537 = vunpack.c.l.b16 %v225
      %v538 = vunpack.c.l.b16 %v226
      %v539 = vunpack.c.l.b16 %v227
      %v540 = vunpack.c.l.b16 %v228
      %v541 = vunpack.c.l.b16 %v229
      %v542 = vunpack.c.l.b16 %v230
      %v543 = vunpack.c.l.b16 %v231
      %v544 = vunpack.c.l.b16 %v232
      %v545 = vunpack.c.l.b16 %v233
      %v546 = vunpack.c.l.b16 %v234
      %v547 = vunpack.c.l.b16 %v235
      %v548 = vunpack.c.l.b16 %v236
      %v549 = vunpack.c.l.b16 %v237
      %v550 = vunpack.c.l.b16 %v238
      %v551 = vunpack.c.l.b16 %v239
      %v552 = vunpack.c.l.b16 %v240
      %v553 = vunpack.c.l.b16 %v241
      %v554 = vunpack.c.l.b16 %v242
      %v555 = vunpack.c.l.b16 %v243
      %v556 = vunpack.c.l.b16 %v244
      %v557 = vunpack.c.l.b16 %v245
      %v558 = vunpack.c.l.b16 %v246
      %v559 = vunpack.c.l.b16 %v247
      %v560 = vunpack.c.l.b16 %v248
      %v561 = vunpack.c.l.b16 %v249
      %v562 = vunpack.c.l.b16 %v250
      %v563 = vunpack.c.l.b16 %v251
      %v564 = vunpack.c.l.b16 %v252
      %v565 = vunpack.c.l.b16 %v253
      %v566 = vunpack.c.l.b16 %v254
      %v567 = vunpack.c.l.b16 %v255
      %v568 = vunpack.c.l.b16 %v256
      %v569 = vunpack.c.l.b16 %v257
      %v570 = vunpack.c.l.b16 %v258
      %v571 = vunpack.c.l.b16 %v259
      %v572 = vunpack.c.l.b16 %v260
      %v573 = vunpack.c.l.b16 %v261
      %v574 = vunpack.c.l.b16 %v262
      %v575 = vunpack.c.l.b16 %v263
      %v576 = vunpack.c.l.b16 %v264
      %v577 = vunpack.c.l.b16 %v265
      %v578 = vunpack.c.l.b16 %v266
      %v579 = vunpack.c.l.b16 %v267
      %v580 = vunpack.c.l.b16 %v268
      %v581 = vunpack.c.l.b16 %v269
      %v582 = vunpack.c.l.b16 %v270
      %v583 = vunpack.c.l.b16 %v271
      %v584 = vunpack.c.l.b16 %v272
      %v585 = vunpack.c.l.b16 %v273
      %v586 = vunpack.c.l.b16 %v274
      %v587 = vunpack.c.l.b16 %v275
      %v588 = vunpack.c.l.b16 %v276
      %v589 = vunpack.c.l.b16 %v277
      %v590 = vunpack.c.l.b16 %v278
      %v591 = vunpack.c.l.b16 %v279
      %v592 = vunpack.c.l.b16 %v280
      %v593 = vunpack.c.l.b16 %v281
      %v594 = vunpack.c.l.b16 %v282
      %v595 = vunpack.c.l.b16 %v283
      %v596 = vunpack.c.l.b16 %v284
      %v597 = vunpack.c.l.b16 %v285
      %v598 = vunpack.c.l.b16 %v286
      %v599 = vunpack.c.l.b16 %v287
      %v600 = vunpack.c.l.b16 %v288
      %v601 = vunpack.c.l.b16 %v289
      %v602 = vunpack.c.l.b16 %v290
      %v603 = vunpack.c.l.b16 %v291
      %v604 = vunpack.c.l.b16 %v292
      %v605 = vunpack.c.l.b16 %v293
      %v606 = vunpack.c.l.b16 %v294
      %v607 = vunpack.c.l.b16 %v295
      %v608 = vunpack.c.l.b16 %v296
      %v609 = vunpack.c.l.b16 %v297
      %v610 = vpack.c.b16 %v515, %v514
      %v611 = vpack.c.b16 %v517, %v516
      %v612 = vpack.c.b16 %v519, %v518
      %v613 = vpack.c.b16 %v521, %v520
      %v614 = vpack.c.b16 %v523, %v522
      %v615 = vpack.c.b16 %v525, %v524
      %v616 = vpack.c.b16 %v527, %v526
      %v617 = vpack.c.b16 %v529, %v528
      %v618 = vpack.c.b16 %v531, %v530
      %v619 = vpack.c.b16 %v533, %v532
      %v620 = vpack.c.b16 %v535, %v534
      %v621 = vpack.c.b16 %v537, %v536
      %v622 = vpack.c.b16 %v539, %v538
      %v623 = vpack.c.b16 %v541, %v540
      %v624 = vpack.c.b16 %v543, %v542
      %v625 = vpack.c.b16 %v545, %v544
      %v626 = vpack.c.b16 %v547, %v546
      %v627 = vpack.c.b16 %v549, %v548
      %v628 = vpack.c.b16 %v551, %v550
      %v629 = vpack.c.b16 %v553, %v552
      %v630 = vpack.c.b16 %v555, %v554
      %v631 = vpack.c.b16 %v557, %v556
      %v632 = vpack.c.b16 %v559, %v558
      %v633 = vpack.c.b16 %v561, %v560
      %v634 = vpack.c.b16 %v563, %v562
      %v635 = vpack.c.b16 %v565, %v564
      %v636 = vpack.c.b16 %v567, %v566
      %v637 = vpack.c.b16 %v569, %v568
      %v638 = vpack.c.b16 %v571, %v570
      %v639 = vpack.c.b16 %v573, %v572
      %v640 = vpack.c.b16 %v575, %v574
      %v641 = vpack.c.b16 %v577, %v576
      %v642 = vpack.c.b16 %v579, %v578
      %v643 = vpack.c.b16 %v581, %v580
      %v644 = vpack.c.b16 %v583, %v582
      %v645 = vpack.c.b16 %v585, %v584
      %v646 = vpack.c.b16 %v587, %v586
      %v647 = vpack.c.b16 %v589, %v588
      %v648 = vpack.c.b16 %v591, %v590
      %v649 = vpack.c.b16 %v593, %v592
      %v650 = vpack.c.b16 %v595, %v594
      %v651 = vpack.c.b16 %v597, %v596
      %v652 = vpack.c.b16 %v599, %v598
      %v653 = vpack.c.b16 %v601, %v600
      %v654 = vpack.c.b16 %v603, %v602
      %v655 = vpack.c.b16 %v605, %v604
      %v656 = vpack.c.b16 %v607, %v606
      %v657 = vpack.c.b16 %v609, %v608
      %706 = vmatprep.subr.bf16.mxu0 0
      %707 = vmatpush1.bf16.msra.mxu0 %v610
      %708 = vmatprep.subr.bf16.mxu0 0
      %709 = vmatpush1.bf16.msra.mxu0 %v611
      %710 = vmatprep.subr.bf16.mxu0 0
      %711 = vmatpush1.bf16.msra.mxu0 %v612
      %712 = vmatprep.subr.bf16.mxu0 0
      %713 = vmatpush1.bf16.msra.mxu0 %v613
      %714 = vmatprep.subr.bf16.mxu0 0
      %715 = vmatpush1.bf16.msra.mxu0 %v614
      %716 = vmatprep.subr.bf16.mxu0 0
      %717 = vmatpush1.bf16.msra.mxu0 %v615
      %718 = vmatprep.subr.bf16.mxu0 0
      %719 = vmatpush1.bf16.msra.mxu0 %v616
      %720 = vmatprep.subr.bf16.mxu0 0
      %721 = vmatpush1.bf16.msra.mxu0 %v617
      %722 = vmatprep.subr.bf16.mxu0 0
      %723 = vmatpush1.bf16.msra.mxu0 %v618
      %724 = vmatprep.subr.bf16.mxu0 0
      %725 = vmatpush1.bf16.msra.mxu0 %v619
      %726 = vmatprep.subr.bf16.mxu0 0
      %727 = vmatpush1.bf16.msra.mxu0 %v620
      %728 = vmatprep.subr.bf16.mxu0 0
      %729 = vmatpush1.bf16.msra.mxu0 %v621
      %730 = vmatprep.subr.bf16.mxu0 0
      %731 = vmatpush1.bf16.msra.mxu0 %v622
      %732 = vmatprep.subr.bf16.mxu0 0
      %733 = vmatpush1.bf16.msra.mxu0 %v623
      %734 = vmatprep.subr.bf16.mxu0 0
      %735 = vmatpush1.bf16.msra.mxu0 %v624
      %736 = vmatprep.subr.bf16.mxu0 0
      %737 = vmatpush1.bf16.msra.mxu0 %v625
      %738 = vmatprep.mubr.bf16.mxu0 %v371
      %739 = vmatmul.mubr.bf16.gmra.mrb[0].mxu0 %v370
      %v740 = vpop.f32.mrb[0].mxu0
      %v741 = vadd.f32 0.0, %v740
      %v742 = vpop.f32.mrb[0].mxu0
      %v743 = vpop.f32.mrb[0].mxu0
      %v744 = vadd.f32 0.0, %v743
      %v745 = vpop.f32.mrb[0].mxu0
      %746 = vmatprep.mubr.bf16.mxu0 %v377
      %747 = vmatmul.mubr.bf16.gmra.mrb[0].mxu0 %v376
      %v748 = vpop.f32.mrb[0].mxu0
      %v749 = vadd.f32 0.0, %v748
      %v750 = vpop.f32.mrb[0].mxu0
      %v751 = vpop.f32.mrb[0].mxu0
      %v752 = vadd.f32 0.0, %v751
      %v753 = vpop.f32.mrb[0].mxu0
      %754 = vmatprep.mubr.bf16.mxu0 %v383
      %755 = vmatmul.mubr.bf16.gmra.mrb[0].mxu0 %v382
      %v756 = vpop.f32.mrb[0].mxu0
      %v757 = vadd.f32 0.0, %v756
      %v758 = vpop.f32.mrb[0].mxu0
      %v759 = vpop.f32.mrb[0].mxu0
      %v760 = vadd.f32 0.0, %v759
      %v761 = vpop.f32.mrb[0].mxu0
      %762 = vmatprep.mubr.bf16.mxu0 %v389
      %763 = vmatmul.mubr.bf16.gmra.mrb[0].mxu0 %v388
      %v764 = vpop.f32.mrb[0].mxu0
      %v765 = vadd.f32 0.0, %v764
      %v766 = vpop.f32.mrb[0].mxu0
      %v767 = vpop.f32.mrb[0].mxu0
      %v768 = vadd.f32 0.0, %v767
      %v769 = vpop.f32.mrb[0].mxu0
      %770 = vdwg.mxu0
      %771 = vmatprep.subr.bf16.mxu0 0
      %772 = vmatpush1.bf16.msra.mxu0 %v626
      %773 = vmatprep.subr.bf16.mxu0 0
      %774 = vmatpush1.bf16.msra.mxu0 %v627
      %775 = vmatprep.subr.bf16.mxu0 0
      %776 = vmatpush1.bf16.msra.mxu0 %v628
      %777 = vmatprep.subr.bf16.mxu0 0
      %778 = vmatpush1.bf16.msra.mxu0 %v629
      %779 = vmatprep.subr.bf16.mxu0 0
      %780 = vmatpush1.bf16.msra.mxu0 %v630
      %781 = vmatprep.subr.bf16.mxu0 0
      %782 = vmatpush1.bf16.msra.mxu0 %v631
      %783 = vmatprep.subr.bf16.mxu0 0
      %784 = vmatpush1.bf16.msra.mxu0 %v632
      %785 = vmatprep.subr.bf16.mxu0 0
      %786 = vmatpush1.bf16.msra.mxu0 %v633
      %787 = vmatprep.subr.bf16.mxu0 0
      %788 = vmatpush1.bf16.msra.mxu0 %v634
      %789 = vmatprep.subr.bf16.mxu0 0
      %790 = vmatpush1.bf16.msra.mxu0 %v635
      %791 = vmatprep.subr.bf16.mxu0 0
      %792 = vmatpush1.bf16.msra.mxu0 %v636
      %793 = vmatprep.subr.bf16.mxu0 0
      %794 = vmatpush1.bf16.msra.mxu0 %v637
      %795 = vmatprep.subr.bf16.mxu0 0
      %796 = vmatpush1.bf16.msra.mxu0 %v638
      %797 = vmatprep.subr.bf16.mxu0 0
      %798 = vmatpush1.bf16.msra.mxu0 %v639
      %799 = vmatprep.subr.bf16.mxu0 0
      %800 = vmatpush1.bf16.msra.mxu0 %v640
      %801 = vmatprep.subr.bf16.mxu0 0
      %802 = vmatpush1.bf16.msra.mxu0 %v641
      %803 = vmatprep.mubr.bf16.mxu0 %v373
      %804 = vmatmul.mubr.bf16.gmra.mrb[0].mxu0 %v372
      %v805 = vpop.f32.mrb[0].mxu0
      %v806 = vadd.f32 %v741, %v805
      %v807 = vpop.f32.mrb[0].mxu0
      %v808 = vpop.f32.mrb[0].mxu0
      %v809 = vadd.f32 %v744, %v808
      %v810 = vpop.f32.mrb[0].mxu0
      %811 = vmatprep.mubr.bf16.mxu0 %v379
      %812 = vmatmul.mubr.bf16.gmra.mrb[0].mxu0 %v378
      %v813 = vpop.f32.mrb[0].mxu0
      %v814 = vadd.f32 %v749, %v813
      %v815 = vpop.f32.mrb[0].mxu0
      %v816 = vpop.f32.mrb[0].mxu0
      %v817 = vadd.f32 %v752, %v816
      %v818 = vpop.f32.mrb[0].mxu0
      %819 = vmatprep.mubr.bf16.mxu0 %v385
      %820 = vmatmul.mubr.bf16.gmra.mrb[0].mxu0 %v384
      %v821 = vpop.f32.mrb[0].mxu0
      %v822 = vadd.f32 %v757, %v821
      %v823 = vpop.f32.mrb[0].mxu0
      %v824 = vpop.f32.mrb[0].mxu0
      %v825 = vadd.f32 %v760, %v824
      %v826 = vpop.f32.mrb[0].mxu0
      %827 = vmatprep.mubr.bf16.mxu0 %v391
      %828 = vmatmul.mubr.bf16.gmra.mrb[0].mxu0 %v390
      %v829 = vpop.f32.mrb[0].mxu0
      %v830 = vadd.f32 %v765, %v829
      %v831 = vpop.f32.mrb[0].mxu0
      %v832 = vpop.f32.mrb[0].mxu0
      %v833 = vadd.f32 %v768, %v832
      %v834 = vpop.f32.mrb[0].mxu0
      %835 = vdwg.mxu0
      %836 = vmatprep.subr.bf16.mxu0 0
      %837 = vmatpush1.bf16.msra.mxu0 %v642
      %838 = vmatprep.subr.bf16.mxu0 0
      %839 = vmatpush1.bf16.msra.mxu0 %v643
      %840 = vmatprep.subr.bf16.mxu0 0
      %841 = vmatpush1.bf16.msra.mxu0 %v644
      %842 = vmatprep.subr.bf16.mxu0 0
      %843 = vmatpush1.bf16.msra.mxu0 %v645
      %844 = vmatprep.subr.bf16.mxu0 0
      %845 = vmatpush1.bf16.msra.mxu0 %v646
      %846 = vmatprep.subr.bf16.mxu0 0
      %847 = vmatpush1.bf16.msra.mxu0 %v647
      %848 = vmatprep.subr.bf16.mxu0 0
      %849 = vmatpush1.bf16.msra.mxu0 %v648
      %850 = vmatprep.subr.bf16.mxu0 0
      %851 = vmatpush1.bf16.msra.mxu0 %v649
      %852 = vmatprep.subr.bf16.mxu0 0
      %853 = vmatpush1.bf16.msra.mxu0 %v650
      %854 = vmatprep.subr.bf16.mxu0 0
      %855 = vmatpush1.bf16.msra.mxu0 %v651
      %856 = vmatprep.subr.bf16.mxu0 0
      %857 = vmatpush1.bf16.msra.mxu0 %v652
      %858 = vmatprep.subr.bf16.mxu0 0
      %859 = vmatpush1.bf16.msra.mxu0 %v653
      %860 = vmatprep.subr.bf16.mxu0 0
      %861 = vmatpush1.bf16.msra.mxu0 %v654
      %862 = vmatprep.subr.bf16.mxu0 0
      %863 = vmatpush1.bf16.msra.mxu0 %v655
      %864 = vmatprep.subr.bf16.mxu0 0
      %865 = vmatpush1.bf16.msra.mxu0 %v656
      %866 = vmatprep.subr.bf16.mxu0 0
      %867 = vmatpush1.bf16.msra.mxu0 %v657
      %868 = vmatprep.mubr.bf16.mxu0 %v375
      %869 = vmatmul.mubr.bf16.gmra.mrb[0].mxu0 %v374
      %v870 = vpop.f32.mrb[0].mxu0
      %v871 = vadd.f32 %v806, %v870
      %v872 = vpop.f32.mrb[0].mxu0
      %v873 = vpop.f32.mrb[0].mxu0
      %v874 = vadd.f32 %v809, %v873
      %v875 = vpop.f32.mrb[0].mxu0
      %876 = vmatprep.mubr.bf16.mxu0 %v381
      %877 = vmatmul.mubr.bf16.gmra.mrb[0].mxu0 %v380
      %v878 = vpop.f32.mrb[0].mxu0
      %v879 = vadd.f32 %v814, %v878
      %v880 = vpop.f32.mrb[0].mxu0
      %v881 = vpop.f32.mrb[0].mxu0
      %v882 = vadd.f32 %v817, %v881
      %v883 = vpop.f32.mrb[0].mxu0
      %884 = vmatprep.mubr.bf16.mxu0 %v387
      %885 = vmatmul.mubr.bf16.gmra.mrb[0].mxu0 %v386
      %v886 = vpop.f32.mrb[0].mxu0
      %v887 = vadd.f32 %v822, %v886
      %v888 = vpop.f32.mrb[0].mxu0
      %v889 = vpop.f32.mrb[0].mxu0
      %v890 = vadd.f32 %v825, %v889
      %v891 = vpop.f32.mrb[0].mxu0
      %892 = vmatprep.mubr.bf16.mxu0 %v393
      %893 = vmatmul.mubr.bf16.gmra.mrb[0].mxu0 %v392
      %v894 = vpop.f32.mrb[0].mxu0
      %v895 = vadd.f32 %v830, %v894
      %v896 = vpop.f32.mrb[0].mxu0
      %v897 = vpop.f32.mrb[0].mxu0
      %v898 = vadd.f32 %v833, %v897
      %v899 = vpop.f32.mrb[0].mxu0
      %900 = vdwg.mxu0
      %v901 = vmax.f32 %v871, 0.0
      %v902 = vmax.f32 %v874, 0.0
      %v903 = vmax.f32 %v879, 0.0
      %v904 = vmax.f32 %v882, 0.0
      %v905 = vmax.f32 %v887, 0.0
      %v906 = vmax.f32 %v890, 0.0
      %v907 = vmax.f32 %v895, 0.0
      %v908 = vmax.f32 %v898, 0.0
      %v909 = vpack.c.bf16 %v902, %v901
      %v910 = vpack.c.bf16 %v904, %v903
      %v911 = vpack.c.bf16 %v906, %v905
      %v912 = vpack.c.bf16 %v908, %v907
      %v913 = vld [vmem:[%s2] sm:$0xf]
      %v914 = vld [vmem:[%s2 + $0x4] sm:$0xf]
      %v915 = vld [vmem:[%s2 + $0x8] sm:$0xf]
      %v916 = vld [vmem:[%s2 + $0xc] sm:$0xf]
      %v921 = vunpack.c.l.b16 %v913
      %v922 = vunpack.c.l.b16 %v914
      %v923 = vunpack.c.l.b16 %v915
      %v924 = vunpack.c.l.b16 %v916
      %v925 = vpack.c.b16 %v922, %v921
      %v926 = vpack.c.b16 %v924, %v923
      %vm929 = vcmask 261120
      %v931 = vsel %vm929, %v909, 0
      %v934 = vsel %vm929, %v910, 0
      %v937 = vsel %vm929, %v911, 0
      %v940 = vsel %vm929, %v912, 0
      %942 = vmatprep.subr.bf16.mxu0 0
      %943 = vmatpush1.bf16.msra.mxu0 %v925
      %944 = vmatprep.subr.bf16.mxu0 0
      %945 = vmatpush1.bf16.msra.mxu0 %v926
      %946 = vmatprep.subr.bf16.mxu0 0
      %947 = vmatpush1.bf16.msra.mxu0 0
      %948 = vmatprep.subr.bf16.mxu0 0
      %949 = vmatpush1.bf16.msra.mxu0 0
      %950 = vmatprep.subr.bf16.mxu0 0
      %951 = vmatpush1.bf16.msra.mxu0 0
      %952 = vmatprep.subr.bf16.mxu0 0
      %953 = vmatpush1.bf16.msra.mxu0 0
      %954 = vmatprep.subr.bf16.mxu0 0
      %955 = vmatpush1.bf16.msra.mxu0 0
      %956 = vmatprep.subr.bf16.mxu0 0
      %957 = vmatpush1.bf16.msra.mxu0 0
      %958 = vmatprep.subr.bf16.mxu0 0
      %959 = vmatpush1.bf16.msra.mxu0 0
      %960 = vmatprep.subr.bf16.mxu0 0
      %961 = vmatpush1.bf16.msra.mxu0 0
      %962 = vmatprep.subr.bf16.mxu0 0
      %963 = vmatpush1.bf16.msra.mxu0 0
      %964 = vmatprep.subr.bf16.mxu0 0
      %965 = vmatpush1.bf16.msra.mxu0 0
      %966 = vmatprep.subr.bf16.mxu0 0
      %967 = vmatpush1.bf16.msra.mxu0 0
      %968 = vmatprep.subr.bf16.mxu0 0
      %969 = vmatpush1.bf16.msra.mxu0 0
      %970 = vmatprep.subr.bf16.mxu0 0
      %971 = vmatpush1.bf16.msra.mxu0 0
      %972 = vmatprep.subr.bf16.mxu0 0
      %973 = vmatpush1.bf16.msra.mxu0 0
      %974 = vmatprep.mubr.bf16.mxu0 0
      %975 = vmatmul.mubr.bf16.gmra.mrb[0].mxu0 %v931
      %v976 = vpop.f32.mrb[0].mxu0
      %v977 = vadd.f32 0.0, %v976
      %v978 = vpop.f32.mrb[0].mxu0
      %v979 = vpop.f32.mrb[0].mxu0
      %v980 = vadd.f32 0.0, %v979
      %v981 = vpop.f32.mrb[0].mxu0
      %982 = vmatprep.mubr.bf16.mxu0 0
      %983 = vmatmul.mubr.bf16.gmra.mrb[0].mxu0 %v934
      %v984 = vpop.f32.mrb[0].mxu0
      %v985 = vadd.f32 0.0, %v984
      %v986 = vpop.f32.mrb[0].mxu0
      %v987 = vpop.f32.mrb[0].mxu0
      %v988 = vadd.f32 0.0, %v987
      %v989 = vpop.f32.mrb[0].mxu0
      %990 = vmatprep.mubr.bf16.mxu0 0
      %991 = vmatmul.mubr.bf16.gmra.mrb[0].mxu0 %v937
      %v992 = vpop.f32.mrb[0].mxu0
      %v993 = vadd.f32 0.0, %v992
      %v994 = vpop.f32.mrb[0].mxu0
      %v995 = vpop.f32.mrb[0].mxu0
      %v996 = vadd.f32 0.0, %v995
      %v997 = vpop.f32.mrb[0].mxu0
      %998 = vmatprep.mubr.bf16.mxu0 0
      %999 = vmatmul.mubr.bf16.gmra.mrb[0].mxu0 %v940
      %v1000 = vpop.f32.mrb[0].mxu0
      %v1001 = vadd.f32 0.0, %v1000
      %v1002 = vpop.f32.mrb[0].mxu0
      %v1003 = vpop.f32.mrb[0].mxu0
      %v1004 = vadd.f32 0.0, %v1003
      %v1005 = vpop.f32.mrb[0].mxu0
      %1006 = vdwg.mxu0
      %vm1007 = vcmask 130048
      %1008 = vst.msk [vmem:[%s175] sm:$0xff] %vm1007, %v977
      %1009 = vst.msk [vmem:[%s175 + $0x8] sm:$0xff] %vm1007, %v980
      %1010 = vst.msk [vmem:[%s175 + $0x10] sm:$0xff] %vm1007, %v985
      %1011 = vst.msk [vmem:[%s175 + $0x18] sm:$0xff] %vm1007, %v988
      %1012 = vst.msk [vmem:[%s175 + $0x20] sm:$0xff] %vm1007, %v993
      %1013 = vst.msk [vmem:[%s175 + $0x28] sm:$0xff] %vm1007, %v996
      %1014 = vst.msk [vmem:[%s175 + $0x30] sm:$0xff] %vm1007, %v1001
      %1015 = vst.msk [vmem:[%s175 + $0x38] sm:$0xff] %vm1007, %v1004
      %s1016 = smul.u32 8, %s14
      %p1017 = scmp.lt.s32.totalorder %s1016, 15
      %s1018 = scalar_select %p1017, %s1016, 15
      %s1019 = smul.addr %s1018, 8
      %s1020 = scalar_lea.vmem %s3, %s1019
      // Predicated region
      $region33: #{tpu_custom_call.1} parent=31 // pred_check
        %p1021 = pneg %p100
      $region34: #{tpu_custom_call.1} parent=31 // pred_check_branch
        %1023 = sbr.rel (%p1021) target = $region36
      $region35: #{tpu_custom_call.1} parent=31 // pred_region
        %s1024 = smul.u32 8, %s14
      $region36: #{tpu_custom_call.1} parent=31 // pred_fallthru
        _
    $region32: #{tpu_custom_call.1} parent=5 // pred_fallthru
      _
    %p1025 = scmp.le.s32.totalorder 2, %s9
    // Predicated region
    $region37: #{tpu_custom_call.1} parent=5 // pred_check
      %p1026 = pneg %p1025
    $region38: #{tpu_custom_call.1} parent=5 // pred_check_branch
      %1028 = sbr.rel (%p1026) target = $region40
    $region39: #{tpu_custom_call.1} parent=5 // pred_region
      %s1029 = ssub.s32 %s9, 2
      // Predicated region
      $region41: #{tpu_custom_call.1} parent=39 // pred_check
        %p1030 = pneg %p106
      $region42: #{tpu_custom_call.1} parent=39 // pred_check_branch
        %1032 = sbr.rel (%p1030) target = $region44
      $region43: #{tpu_custom_call.1} parent=39 // pred_region
        %s1033 = smul.u32 8, %s15
        %p1034 = scmp.lt.s32.totalorder %s1033, 15
        %s1035 = scalar_select %p1034, %s1033, 15
        %s1036 = smul.addr %s1035, 8
        %s1037 = scalar_lea.vmem %s3, %s1036
      $region44: #{tpu_custom_call.1} parent=39 // pred_fallthru
        _
    $region40: #{tpu_custom_call.1} parent=5 // pred_fallthru
      _
  $region6: #{tpu_custom_call.1} parent=0 // loop_footer
    %s13 = sadd.s32 1, %s9
  $region7: #{tpu_custom_call.1} parent=0 // loop_footer_branch
    %8 = sbr.rel target = $region3
  $region8: #{tpu_custom_call.1} parent=0 // loop_exit
    _

</llo_original>
